<compile_context>
chip_gen: v6e
topology: v6e:2x2x1
jax: 0.10.0
libtpu: 0.0.40
codegen_flags: <defaults>
</compile_context>

<pallas_src>
import numpy as np
import jax
import jax.numpy as jnp
from jax.experimental import pallas as pl
from jax.experimental.pallas import tpu as pltpu

EPS = 1e-5


def transition_down_kernel(x_ref, scale_ref, shift_ref, w_ref, o_ref):
    # x_ref:     (4, Cin, TR)  pixels grouped by 2x2-window position (lanes = pixels)
    # scale_ref: (Cin, 1)      folded BN scale  = gamma * rsqrt(var + eps)
    # shift_ref: (Cin, 1)      folded BN shift  = beta - mean * scale
    # w_ref:     (Cout, Cin)   1x1 conv weight (squeezed, f32)
    # o_ref:     (Cout, TR)    pooled + projected output (lane-dense store)
    scale = scale_ref[...]
    shift = shift_ref[...]

    # Fused BN (pre-folded scale/shift) + ReLU per window position, then 2x2 average.
    a = jnp.maximum(x_ref[0] * scale + shift, 0.0)
    a = a + jnp.maximum(x_ref[1] * scale + shift, 0.0)
    a = a + jnp.maximum(x_ref[2] * scale + shift, 0.0)
    a = a + jnp.maximum(x_ref[3] * scale + shift, 0.0)
    pooled = a * 0.25                                  # (Cin, TR)

    # Dropout2d is identity at inference time.
    # 1x1 conv == channel-mixing matmul; done AFTER pooling (they commute) -> 4x fewer MXU flops.
    o_ref[...] = jnp.dot(w_ref[...], pooled,
                         preferred_element_type=jnp.float32).astype(o_ref.dtype)


def _choose_tile(r4, c_in, max_block_bytes=4 << 20, cap=2048):
    """Row tile (multiple of 128, <= cap, <= VMEM budget) and padded pixel count."""
    bytes_per_lane = 4 * c_in * 4                     # 4 window positions * Cin * f32
    budget = max(128, (max_block_bytes // bytes_per_lane) // 128 * 128)
    r4_up = ((r4 + 127) // 128) * 128
    tr = max(128, (min(cap, budget, r4_up) // 128) * 128)
    r4p = ((r4 + tr - 1) // tr) * tr
    return tr, r4p


@jax.jit
def densenet_transition_down(x_nchw, gamma, beta, conv_w):
    """x_nchw: (N, C_in, H, W). conv_w: (C_out, C_in) or (C_out, C_in, 1, 1)."""
    n, c_in, h, w = x_nchw.shape
    conv_w = conv_w.reshape(conv_w.shape[0], -1)
    c_out = conv_w.shape[0]
    h2, w2 = h // 2, w // 2

    x = x_nchw.astype(jnp.float32)

    # BatchNorm2d with track_running_stats=False always uses batch statistics
    # (biased variance) over all N*H*W pixels per channel.  Single fused pass over x.
    mean = jnp.mean(x, axis=(0, 2, 3))
    meansq = jnp.mean(x * x, axis=(0, 2, 3))
    var = jnp.maximum(meansq - mean * mean, 0.0)
    scale_vec = gamma.astype(jnp.float32) * jax.lax.rsqrt(var + EPS)
    shift_vec = beta.astype(jnp.float32) - mean * scale_vec
    scale = scale_vec.reshape(c_in, 1)
    shift = shift_vec.reshape(c_in, 1)

    # AvgPool2d(2,2) floors odd spatial dims: crop AFTER computing BN stats.
    x_c = x[:, :, :2 * h2, :2 * w2] if (h != 2 * h2 or w != 2 * w2) else x

    # Single reshape+transpose pass: group pixels by position inside each 2x2 pooling
    # window and put pixels on the lane dim -> (4, Cin, R4), R4 = N*(H/2)*(W/2).
    r4 = n * h2 * w2
    x_grp = jnp.transpose(x_c.reshape(n, c_in, h2, 2, w2, 2),
                          (3, 5, 1, 0, 2, 4)).reshape(4, c_in, r4)

    tr, r4p = _choose_tile(r4, c_in)
    if r4p != r4:                       # pad pixel axis so every tile is full & 128-aligned
        x_grp = jnp.pad(x_grp, ((0, 0), (0, 0), (0, r4p - r4)))

    w2d = conv_w.astype(jnp.float32)

    grid_spec = pltpu.PrefetchScalarGridSpec(
        num_scalar_prefetch=0,
        grid=(r4p // tr,),
        in_specs=[
            pl.BlockSpec((4, c_in, tr), lambda i: (0, 0, i)),
            pl.BlockSpec((c_in, 1), lambda i: (0, 0)),
            pl.BlockSpec((c_in, 1), lambda i: (0, 0)),
            pl.BlockSpec((c_out, c_in), lambda i: (0, 0)),
        ],
        out_specs=pl.BlockSpec((c_out, tr), lambda i: (0, i)),
    )

    pooled = pl.pallas_call(
        transition_down_kernel,
        out_shape=jax.ShapeDtypeStruct((c_out, r4p), jnp.float32),
        grid_spec=grid_spec,
        compiler_params=pltpu.CompilerParams(
            dimension_semantics=("parallel",)),   # independent row tiles -> megacore shards
    )(x_grp, scale, shift, w2d)

    # (Cout, R4p) -> drop pad -> (Cout, N, H/2, W/2) -> NCHW
    pooled = pooled[:, :r4]
    return jnp.transpose(pooled.reshape(c_out, n, h2, w2), (1, 0, 2, 3))


def reference(x_nchw, gamma, beta, conv_w):
    """Pure-JAX reference mirroring the PyTorch forward (eval-mode dropout)."""
    x = x_nchw.astype(jnp.float32)
    mean = jnp.mean(x, axis=(0, 2, 3), keepdims=True)
    var = jnp.mean((x - mean) ** 2, axis=(0, 2, 3), keepdims=True)
    xn = (x - mean) / jnp.sqrt(var + EPS)
    xn = xn * gamma.reshape(1, -1, 1, 1) + beta.reshape(1, -1, 1, 1)
    xa = jnp.maximum(xn, 0.0)
    w2d = conv_w.reshape(conv_w.shape[0], -1).astype(jnp.float32)
    y = jnp.einsum('nchw,oc->nohw', xa, w2d)
    n, c, h, w = y.shape
    h2, w2 = h // 2, w // 2
    y = y[:, :, :2 * h2, :2 * w2].reshape(n, c, h2, 2, w2, 2).mean(axis=(3, 5))
    return y


if __name__ == "__main__":
    key = jax.random.PRNGKey(0)
    k_x, k_w, k_g, k_b, k_x2 = jax.random.split(key, 5)

    # Small shapes consistent with the module: c_out = int(0.1 * c_in) must be >= 1.
    N, C_IN, H, W = 2, 40, 16, 16
    C_OUT = int(0.1 * C_IN)  # = 4

    x = jax.random.normal(k_x, (N, C_IN, H, W), dtype=jnp.float32)
    # Conv2d(c_in, c_out, kernel_size=1, bias=False) weight (squeezed), kaiming-like init.
    conv_w = jax.random.normal(k_w, (C_OUT, C_IN), dtype=jnp.float32) * jnp.sqrt(2.0 / C_IN)
    gamma = 1.0 + 0.1 * jax.random.normal(k_g, (C_IN,), dtype=jnp.float32)
    beta = 0.1 * jax.random.normal(k_b, (C_IN,), dtype=jnp.float32)

    out = jax.block_until_ready(densenet_transition_down(x, gamma, beta, conv_w))
    ref = jax.block_until_ready(reference(x, gamma, beta, conv_w))
    assert out.shape == (N, C_OUT, H // 2, W // 2), out.shape
    np.testing.assert_allclose(np.asarray(out), np.asarray(ref), rtol=1e-4, atol=1e-4)

    # Second case exercising the pixel-padding and odd-spatial (floor-pool) paths; the
    # in-kernel block shapes are identical to the first case, so no new lowering.
    x2 = jax.random.normal(k_x2, (1, C_IN, 9, 6), dtype=jnp.float32)
    out2 = jax.block_until_ready(densenet_transition_down(x2, gamma, beta, conv_w))
    ref2 = jax.block_until_ready(reference(x2, gamma, beta, conv_w))
    assert out2.shape == (1, C_OUT, 4, 3), out2.shape
    np.testing.assert_allclose(np.asarray(out2), np.asarray(ref2), rtol=1e-4, atol=1e-4)

    # TODO(synk): Dropout2d is implemented as inference-mode identity; train-mode
    # per-channel dropout would need a PRNG mask (pltpu.prng_*) and is out of scope.
    print("KERNEL_OK")
</pallas_src>

<mosaic_0001>
module attributes {stable_mosaic.version = 11 : i64} {
  func.func @transition_down_kernel(%arg0: i32, %arg1: memref<4x40x128xf32, #tpu.memory_space<vmem>>, %arg2: memref<40x1xf32, #tpu.memory_space<vmem>>, %arg3: memref<40x1xf32, #tpu.memory_space<vmem>>, %arg4: memref<4x40xf32, #tpu.memory_space<vmem>>, %arg5: memref<4x128xf32, #tpu.memory_space<vmem>>) attributes {dimension_semantics = [#tpu.dimension_semantics<parallel>], iteration_bounds = array<i64: 1>, scalar_prefetch = 0 : i64, scratch_operands = 0 : i64, tpu.core_type = #tpu.core_type<tc>, window_params = [{transform_indices = @transform_0, window_bounds = array<i64: 4, 40, 128>}, {pipeline_mode = #tpu.pipeline_mode<synchronous>, transform_indices = @transform_1, window_bounds = array<i64: 40, 1>}, {pipeline_mode = #tpu.pipeline_mode<synchronous>, transform_indices = @transform_2, window_bounds = array<i64: 40, 1>}, {pipeline_mode = #tpu.pipeline_mode<synchronous>, transform_indices = @transform_3, window_bounds = array<i64: 4, 40>}, {transform_indices = @transform_4, window_bounds = array<i64: 4, 128>}]} {
    %c0 = arith.constant 0 : index
    %c0_0 = arith.constant 0 : index
    %0 = vector.load %arg2[%c0, %c0_0] : memref<40x1xf32, #tpu.memory_space<vmem>>, vector<40x1xf32>
    %c0_1 = arith.constant 0 : index
    %c0_2 = arith.constant 0 : index
    %1 = vector.load %arg3[%c0_1, %c0_2] : memref<40x1xf32, #tpu.memory_space<vmem>>, vector<40x1xf32>
    %c0_3 = arith.constant 0 : index
    %c0_4 = arith.constant 0 : index
    %c0_5 = arith.constant 0 : index
    %2 = vector.load %arg1[%c0_3, %c0_4, %c0_5] : memref<4x40x128xf32, #tpu.memory_space<vmem>>, vector<1x40x128xf32>
    %3 = vector.shape_cast %2 : vector<1x40x128xf32> to vector<40x128xf32>
    %4 = vector.broadcast %0 : vector<40x1xf32> to vector<40x128xf32>
    %5 = arith.mulf %3, %4 : vector<40x128xf32>
    %6 = vector.broadcast %1 : vector<40x1xf32> to vector<40x128xf32>
    %7 = arith.addf %5, %6 : vector<40x128xf32>
    %cst = arith.constant 0.000000e+00 : f32
    %8 = vector.broadcast %cst : f32 to vector<40x128xf32>
    %9 = arith.maximumf %7, %8 : vector<40x128xf32>
    %c1 = arith.constant 1 : index
    %c0_6 = arith.constant 0 : index
    %c0_7 = arith.constant 0 : index
    %10 = vector.load %arg1[%c1, %c0_6, %c0_7] : memref<4x40x128xf32, #tpu.memory_space<vmem>>, vector<1x40x128xf32>
    %11 = vector.shape_cast %10 : vector<1x40x128xf32> to vector<40x128xf32>
    %12 = vector.broadcast %0 : vector<40x1xf32> to vector<40x128xf32>
    %13 = arith.mulf %11, %12 : vector<40x128xf32>
    %14 = vector.broadcast %1 : vector<40x1xf32> to vector<40x128xf32>
    %15 = arith.addf %13, %14 : vector<40x128xf32>
    %cst_8 = arith.constant 0.000000e+00 : f32
    %16 = vector.broadcast %cst_8 : f32 to vector<40x128xf32>
    %17 = arith.maximumf %15, %16 : vector<40x128xf32>
    %18 = arith.addf %9, %17 : vector<40x128xf32>
    %c2 = arith.constant 2 : index
    %c0_9 = arith.constant 0 : index
    %c0_10 = arith.constant 0 : index
    %19 = vector.load %arg1[%c2, %c0_9, %c0_10] : memref<4x40x128xf32, #tpu.memory_space<vmem>>, vector<1x40x128xf32>
    %20 = vector.shape_cast %19 : vector<1x40x128xf32> to vector<40x128xf32>
    %21 = vector.broadcast %0 : vector<40x1xf32> to vector<40x128xf32>
    %22 = arith.mulf %20, %21 : vector<40x128xf32>
    %23 = vector.broadcast %1 : vector<40x1xf32> to vector<40x128xf32>
    %24 = arith.addf %22, %23 : vector<40x128xf32>
    %cst_11 = arith.constant 0.000000e+00 : f32
    %25 = vector.broadcast %cst_11 : f32 to vector<40x128xf32>
    %26 = arith.maximumf %24, %25 : vector<40x128xf32>
    %27 = arith.addf %18, %26 : vector<40x128xf32>
    %c3 = arith.constant 3 : index
    %c0_12 = arith.constant 0 : index
    %c0_13 = arith.constant 0 : index
    %28 = vector.load %arg1[%c3, %c0_12, %c0_13] : memref<4x40x128xf32, #tpu.memory_space<vmem>>, vector<1x40x128xf32>
    %29 = vector.shape_cast %28 : vector<1x40x128xf32> to vector<40x128xf32>
    %30 = vector.broadcast %0 : vector<40x1xf32> to vector<40x128xf32>
    %31 = arith.mulf %29, %30 : vector<40x128xf32>
    %32 = vector.broadcast %1 : vector<40x1xf32> to vector<40x128xf32>
    %33 = arith.addf %31, %32 : vector<40x128xf32>
    %cst_14 = arith.constant 0.000000e+00 : f32
    %34 = vector.broadcast %cst_14 : f32 to vector<40x128xf32>
    %35 = arith.maximumf %33, %34 : vector<40x128xf32>
    %36 = arith.addf %27, %35 : vector<40x128xf32>
    %cst_15 = arith.constant 2.500000e-01 : f32
    %37 = vector.broadcast %cst_15 : f32 to vector<40x128xf32>
    %38 = arith.mulf %36, %37 : vector<40x128xf32>
    %c0_16 = arith.constant 0 : index
    %c0_17 = arith.constant 0 : index
    %39 = vector.load %arg4[%c0_16, %c0_17] : memref<4x40xf32, #tpu.memory_space<vmem>>, vector<4x40xf32>
    %cst_18 = arith.constant dense<0.000000e+00> : vector<4x128xf32>
    %40 = tpu.matmul %39, %38, %cst_18 {dimension_numbers = #tpu.dot_dimension_numbers<[1], [0], [0], [1], [0, 0, 1, 1], [], []>} : vector<4x40xf32>, vector<40x128xf32>, vector<4x128xf32> -> vector<4x128xf32>
    %c0_19 = arith.constant 0 : index
    %c0_20 = arith.constant 0 : index
    %41 = vector.load %arg5[%c0_19, %c0_20] : memref<4x128xf32, #tpu.memory_space<vmem>>, vector<4x128xf32>
    tpu.vector_store %arg5[%c0_19, %c0_20], %40 {strides = array<i32>} : memref<4x128xf32, #tpu.memory_space<vmem>>, vector<4x128xf32>,
    return
  }
  func.func @transform_0(%arg0: i32) -> (i32, i32, i32) {
    %c0_i32 = arith.constant 0 : i32
    %c0_i32_0 = arith.constant 0 : i32
    %c0_i32_1 = arith.constant 0 : i32
    return %c0_i32, %c0_i32_0, %arg0 : i32, i32, i32
  }
  func.func @transform_1(%arg0: i32) -> (i32, i32) {
    %c0_i32 = arith.constant 0 : i32
    %c0_i32_0 = arith.constant 0 : i32
    %c0_i32_1 = arith.constant 0 : i32
    return %c0_i32, %c0_i32_0 : i32, i32
  }
  func.func @transform_2(%arg0: i32) -> (i32, i32) {
    %c0_i32 = arith.constant 0 : i32
    %c0_i32_0 = arith.constant 0 : i32
    %c0_i32_1 = arith.constant 0 : i32
    return %c0_i32, %c0_i32_0 : i32, i32
  }
  func.func @transform_3(%arg0: i32) -> (i32, i32) {
    %c0_i32 = arith.constant 0 : i32
    %c0_i32_0 = arith.constant 0 : i32
    %c0_i32_1 = arith.constant 0 : i32
    return %c0_i32, %c0_i32_0 : i32, i32
  }
  func.func @transform_4(%arg0: i32) -> (i32, i32) {
    %c0_i32 = arith.constant 0 : i32
    %c0_i32_0 = arith.constant 0 : i32
    return %c0_i32, %arg0 : i32, i32
  }
}

</mosaic_0001>

<llo_original>
// kernel: densenet_transition_down.1
$region0: #{densenet_transition_down.1}
  #allocation0 [shape = 'u32[]', space=smem, size = 0x4, offset = 0x4, fixed_abs, tag = 'smem constant byte address 0x4 - core index']
  #allocation1 [shape = 'u32[144,128]{1,0:T(1,128)}', space=vmem, size = 0x12000, scoped, tag = 'internal scratch']
  %s0 = inlined_call_operand.vmem [shape: f32[4,40,128], index: 0, kind: input, shape index: {}]
  %s1 = inlined_call_operand.vmem [shape: f32[40,1], index: 1, kind: input, shape index: {}]
  %s2 = inlined_call_operand.vmem [shape: f32[40,1], index: 2, kind: input, shape index: {}]
  %s3 = inlined_call_operand.vmem [shape: f32[4,40], index: 3, kind: input, shape index: {}]
  %s4 = inlined_call_operand.vmem [shape: f32[4,128], index: 4, kind: output, shape index: {}]
  %s5 = sld [smem:[#allocation0]]
  $region26: #{densenet_transition_down.1} parent=0
    _
  %s7 = ssub.s32 1, %s5
  %s8 = scalar_select 0, %s7, %s5
  // Predicated region
  $region2: #{densenet_transition_down.1} parent=0 // pred_check
    _
  $region3: #{densenet_transition_down.1} parent=0 // pred_check_branch
    %10 = sbr.rel (0) target = $region5
  $region4: #{densenet_transition_down.1} parent=0 // pred_region
    _
  $region5: #{densenet_transition_down.1} parent=0 // pred_fallthru
    _
  // Predicated region
  $region6: #{densenet_transition_down.1} parent=0 // pred_check
    _
  $region7: #{densenet_transition_down.1} parent=0 // pred_check_branch
    %12 = sbr.rel (0) target = $region9
  $region8: #{densenet_transition_down.1} parent=0 // pred_region
    _
  $region9: #{densenet_transition_down.1} parent=0 // pred_fallthru
    _
  // Predicated region
  $region10: #{densenet_transition_down.1} parent=0 // pred_check
    _
  $region11: #{densenet_transition_down.1} parent=0 // pred_check_branch
    %14 = sbr.rel (0) target = $region13
  $region12: #{densenet_transition_down.1} parent=0 // pred_region
    _
  $region13: #{densenet_transition_down.1} parent=0 // pred_fallthru
    _
  // Predicated region
  $region14: #{densenet_transition_down.1} parent=0 // pred_check
    _
  $region15: #{densenet_transition_down.1} parent=0 // pred_check_branch
    %16 = sbr.rel (0) target = $region17
  $region16: #{densenet_transition_down.1} parent=0 // pred_region
    _
  $region17: #{densenet_transition_down.1} parent=0 // pred_fallthru
    _
  %v17 = vld [vmem:[%s1] sm:$0xff]
  %v18 = vld [vmem:[%s1 + $0x8] sm:$0xff]
  %v19 = vld [vmem:[%s1 + $0x10] sm:$0xff]
  %v20 = vld [vmem:[%s1 + $0x18] sm:$0xff]
  %v21 = vld [vmem:[%s1 + $0x20] sm:$0xff]
  %v22 = vld [vmem:[%s2] sm:$0xff]
  %v23 = vld [vmem:[%s2 + $0x8] sm:$0xff]
  %v24 = vld [vmem:[%s2 + $0x10] sm:$0xff]
  %v25 = vld [vmem:[%s2 + $0x18] sm:$0xff]
  %v26 = vld [vmem:[%s2 + $0x20] sm:$0xff]
  %v27 = vld [vmem:[%s0] sm:$0xff]
  %v28 = vld [vmem:[%s0 + $0x8] sm:$0xff]
  %v29 = vld [vmem:[%s0 + $0x10] sm:$0xff]
  %v30 = vld [vmem:[%s0 + $0x18] sm:$0xff]
  %v31 = vld [vmem:[%s0 + $0x20] sm:$0xff]
  %33 = vset.pattern.permute.xlu0 0
  %34 = vperm.xlu0 %33, %v17
  %v35 = vpop.permute.xlu0 %34
  %38 = vset.pattern.permute.xlu0 0
  %39 = vperm.xlu0 %38, %v18
  %v40 = vpop.permute.xlu0 %39
  %43 = vset.pattern.permute.xlu0 0
  %44 = vperm.xlu0 %43, %v19
  %v45 = vpop.permute.xlu0 %44
  %48 = vset.pattern.permute.xlu0 0
  %49 = vperm.xlu0 %48, %v20
  %v50 = vpop.permute.xlu0 %49
  %53 = vset.pattern.permute.xlu0 0
  %54 = vperm.xlu0 %53, %v21
  %v55 = vpop.permute.xlu0 %54
  %v57 = vmul.f32 %v27, %v35
  %v58 = vmul.f32 %v28, %v40
  %v59 = vmul.f32 %v29, %v45
  %v60 = vmul.f32 %v30, %v50
  %v61 = vmul.f32 %v31, %v55
  %63 = vset.pattern.permute.xlu0 0
  %64 = vperm.xlu0 %63, %v22
  %v65 = vpop.permute.xlu0 %64
  %68 = vset.pattern.permute.xlu0 0
  %69 = vperm.xlu0 %68, %v23
  %v70 = vpop.permute.xlu0 %69
  %73 = vset.pattern.permute.xlu0 0
  %74 = vperm.xlu0 %73, %v24
  %v75 = vpop.permute.xlu0 %74
  %78 = vset.pattern.permute.xlu0 0
  %79 = vperm.xlu0 %78, %v25
  %v80 = vpop.permute.xlu0 %79
  %83 = vset.pattern.permute.xlu0 0
  %84 = vperm.xlu0 %83, %v26
  %v85 = vpop.permute.xlu0 %84
  %v87 = vadd.f32 %v57, %v65
  %v88 = vadd.f32 %v58, %v70
  %v89 = vadd.f32 %v59, %v75
  %v90 = vadd.f32 %v60, %v80
  %v91 = vadd.f32 %v61, %v85
  %v92 = vmax.f32 %v87, 0.0
  %v93 = vmax.f32 %v88, 0.0
  %v94 = vmax.f32 %v89, 0.0
  %v95 = vmax.f32 %v90, 0.0
  %v96 = vmax.f32 %v91, 0.0
  %s97 = scalar_lea.vmem %s0, 40
  %v98 = vld [vmem:[%s97] sm:$0xff]
  %v99 = vld [vmem:[%s97 + $0x8] sm:$0xff]
  %v100 = vld [vmem:[%s97 + $0x10] sm:$0xff]
  %v101 = vld [vmem:[%s97 + $0x18] sm:$0xff]
  %v102 = vld [vmem:[%s97 + $0x20] sm:$0xff]
  %v103 = vmul.f32 %v98, %v35
  %v104 = vmul.f32 %v99, %v40
  %v105 = vmul.f32 %v100, %v45
  %v106 = vmul.f32 %v101, %v50
  %v107 = vmul.f32 %v102, %v55
  %v108 = vadd.f32 %v103, %v65
  %v109 = vadd.f32 %v104, %v70
  %v110 = vadd.f32 %v105, %v75
  %v111 = vadd.f32 %v106, %v80
  %v112 = vadd.f32 %v107, %v85
  %v113 = vmax.f32 %v108, 0.0
  %v114 = vmax.f32 %v109, 0.0
  %v115 = vmax.f32 %v110, 0.0
  %v116 = vmax.f32 %v111, 0.0
  %v117 = vmax.f32 %v112, 0.0
  %v118 = vadd.f32 %v92, %v113
  %v119 = vadd.f32 %v93, %v114
  %v120 = vadd.f32 %v94, %v115
  %v121 = vadd.f32 %v95, %v116
  %v122 = vadd.f32 %v96, %v117
  %s123 = scalar_lea.vmem %s0, 80
  %v124 = vld [vmem:[%s123] sm:$0xff]
  %v125 = vld [vmem:[%s123 + $0x8] sm:$0xff]
  %v126 = vld [vmem:[%s123 + $0x10] sm:$0xff]
  %v127 = vld [vmem:[%s123 + $0x18] sm:$0xff]
  %v128 = vld [vmem:[%s123 + $0x20] sm:$0xff]
  %v129 = vmul.f32 %v124, %v35
  %v130 = vmul.f32 %v125, %v40
  %v131 = vmul.f32 %v126, %v45
  %v132 = vmul.f32 %v127, %v50
  %v133 = vmul.f32 %v128, %v55
  %v134 = vadd.f32 %v129, %v65
  %v135 = vadd.f32 %v130, %v70
  %v136 = vadd.f32 %v131, %v75
  %v137 = vadd.f32 %v132, %v80
  %v138 = vadd.f32 %v133, %v85
  %v139 = vmax.f32 %v134, 0.0
  %v140 = vmax.f32 %v135, 0.0
  %v141 = vmax.f32 %v136, 0.0
  %v142 = vmax.f32 %v137, 0.0
  %v143 = vmax.f32 %v138, 0.0
  %v144 = vadd.f32 %v118, %v139
  %v145 = vadd.f32 %v119, %v140
  %v146 = vadd.f32 %v120, %v141
  %v147 = vadd.f32 %v121, %v142
  %v148 = vadd.f32 %v122, %v143
  %s149 = scalar_lea.vmem %s0, 120
  %v150 = vld [vmem:[%s149] sm:$0xff]
  %v151 = vld [vmem:[%s149 + $0x8] sm:$0xff]
  %v152 = vld [vmem:[%s149 + $0x10] sm:$0xff]
  %v153 = vld [vmem:[%s149 + $0x18] sm:$0xff]
  %v154 = vld [vmem:[%s149 + $0x20] sm:$0xff]
  %v155 = vmul.f32 %v150, %v35
  %v156 = vmul.f32 %v151, %v40
  %v157 = vmul.f32 %v152, %v45
  %v158 = vmul.f32 %v153, %v50
  %v159 = vmul.f32 %v154, %v55
  %v160 = vadd.f32 %v155, %v65
  %v161 = vadd.f32 %v156, %v70
  %v162 = vadd.f32 %v157, %v75
  %v163 = vadd.f32 %v158, %v80
  %v164 = vadd.f32 %v159, %v85
  %v165 = vmax.f32 %v160, 0.0
  %v166 = vmax.f32 %v161, 0.0
  %v167 = vmax.f32 %v162, 0.0
  %v168 = vmax.f32 %v163, 0.0
  %v169 = vmax.f32 %v164, 0.0
  %v170 = vadd.f32 %v144, %v165
  %v171 = vadd.f32 %v145, %v166
  %v172 = vadd.f32 %v146, %v167
  %v173 = vadd.f32 %v147, %v168
  %v174 = vadd.f32 %v148, %v169
  %v175 = vmul.f32 %v170, 0.25
  %v176 = vmul.f32 %v171, 0.25
  %v177 = vmul.f32 %v172, 0.25
  %v178 = vmul.f32 %v173, 0.25
  %v179 = vmul.f32 %v174, 0.25
  %v180 = vld [vmem:[%s3] sm:$0xf]
  %vm181 = vcmask 326656
  %v183 = vsel %vm181, %v180, 0
  %185 = vmatprep.subr.mxu0 0.0
  %186 = vmatpush1.msra.mxu0 0.0
  %187 = vmatprep.subr.mxu0 0.0
  %188 = vmatpush1.msra.mxu0 0.0
  %189 = vmatprep.subr.mxu0 0.0
  %190 = vmatpush1.msra.mxu0 0.0
  %191 = vmatprep.subr.mxu0 0.0
  %192 = vmatpush1.msra.mxu0 0.0
  %193 = vmatprep.subr.mxu0 0.0
  %194 = vmatpush1.msra.mxu0 0.0
  %195 = vmatprep.subr.mxu0 0.0
  %196 = vmatpush1.msra.mxu0 0.0
  %197 = vmatprep.subr.mxu0 0.0
  %198 = vmatpush1.msra.mxu0 0.0
  %199 = vmatprep.subr.mxu0 0.0
  %200 = vmatpush1.msra.mxu0 0.0
  %201 = vmatprep.subr.mxu0 0.0
  %202 = vmatpush1.msra.mxu0 0.0
  %203 = vmatprep.subr.mxu0 0.0
  %204 = vmatpush1.msra.mxu0 0.0
  %205 = vmatprep.subr.mxu0 0.0
  %206 = vmatpush1.msra.mxu0 0.0
  %207 = vmatprep.subr.mxu0 0.0
  %208 = vmatpush1.msra.mxu0 %v179
  %209 = vmatprep.subr.mxu0 0.0
  %210 = vmatpush1.msra.mxu0 %v178
  %211 = vmatprep.subr.mxu0 0.0
  %212 = vmatpush1.msra.mxu0 %v177
  %213 = vmatprep.subr.mxu0 0.0
  %214 = vmatpush1.msra.mxu0 %v176
  %215 = vmatprep.subr.mxu0 0.0
  %216 = vmatpush1.msra.mxu0 %v175
  %217 = vmatprep.subr.mxu0 0.0
  %218 = vmatpush2.msra.mxu0 0.0
  %219 = vmatprep.subr.mxu0 0.0
  %220 = vmatpush2.msra.mxu0 0.0
  %221 = vmatprep.subr.mxu0 0.0
  %222 = vmatpush2.msra.mxu0 0.0
  %223 = vmatprep.subr.mxu0 0.0
  %224 = vmatpush2.msra.mxu0 0.0
  %225 = vmatprep.subr.mxu0 0.0
  %226 = vmatpush2.msra.mxu0 0.0
  %227 = vmatprep.subr.mxu0 0.0
  %228 = vmatpush2.msra.mxu0 0.0
  %229 = vmatprep.subr.mxu0 0.0
  %230 = vmatpush2.msra.mxu0 0.0
  %231 = vmatprep.subr.mxu0 0.0
  %232 = vmatpush2.msra.mxu0 0.0
  %233 = vmatprep.subr.mxu0 0.0
  %234 = vmatpush2.msra.mxu0 0.0
  %235 = vmatprep.subr.mxu0 0.0
  %236 = vmatpush2.msra.mxu0 0.0
  %237 = vmatprep.subr.mxu0 0.0
  %238 = vmatpush2.msra.mxu0 0.0
  %239 = vmatprep.subr.mxu0 0.0
  %240 = vmatpush2.msra.mxu0 0.0
  %241 = vmatprep.subr.mxu0 0.0
  %242 = vmatpush2.msra.mxu0 0.0
  %243 = vmatprep.subr.mxu0 0.0
  %244 = vmatpush2.msra.mxu0 0.0
  %245 = vmatprep.subr.mxu0 0.0
  %246 = vmatpush2.msra.mxu0 0.0
  %247 = vmatprep.subr.mxu0 0.0
  %248 = vmatpush2.msra.mxu0 0.0
  %249 = vmatprep.mubr.f32.mxu0 0.0
  %250 = vmatmul.mubr.f32.gmra.mxu0 %v183
  %v251 = vpop.f32.mrf.mxu0
  %v252 = vadd.f32 0.0, %v251
  %v253 = vpop.f32.mrf.mxu0
  %254 = vdwg.mxu0
  %255 = vst [vmem:[%s4] sm:$0xf] %v252
  // Predicated region
  $region18: #{densenet_transition_down.1} parent=0 // pred_check
    _
  $region19: #{densenet_transition_down.1} parent=0 // pred_check_branch
    %257 = sbr.rel (0) target = $region21
  $region20: #{densenet_transition_down.1} parent=0 // pred_region
    _
  $region21: #{densenet_transition_down.1} parent=0 // pred_fallthru
    _
  // Predicated region
  $region22: #{densenet_transition_down.1} parent=0 // pred_check
    _
  $region23: #{densenet_transition_down.1} parent=0 // pred_check_branch
    %259 = sbr.rel (0) target = $region25
  $region24: #{densenet_transition_down.1} parent=0 // pred_region
    _
  $region25: #{densenet_transition_down.1} parent=0 // pred_fallthru
    _

</llo_original>
